<compile_context>
chip_gen: v6e
topology: v6e:2x2x1
jax: 0.10.0
libtpu: 0.0.40
codegen_flags: <defaults>
</compile_context>

<pallas_src>
import jax
import jax.numpy as jnp
from jax import lax
from jax.experimental import pallas as pl
from jax.experimental.pallas import tpu as pltpu


def _round_up(n, m):
    return ((n + m - 1) // m) * m


# ------------------------------ fused KT kernel -------------------------------
def _make_kt_kernel(T, Bp, num_layer):
    """Build the fused kernel for static (T, padded batch Bp, num_layer)."""

    def kernel(*refs):
        # inputs:  x_ref (T*Bp, I),
        #          per layer: wih_t (I_l, Hp), whh_t (Hp, Hp), b (1, Hp),
        #          wfc_t (Hp, Qp), bfc (1, Qp)
        # outputs: out_ref (T*Bp, Qp)
        # scratch: xproj_ref (T*Bp, Hp), h_all_ref (T*Bp, Hp)
        x_ref = refs[0]
        layer_refs = refs[1:1 + 3 * num_layer]
        wfc_ref = refs[1 + 3 * num_layer]
        bfc_ref = refs[2 + 3 * num_layer]
        out_ref = refs[3 + 3 * num_layer]
        xproj_ref = refs[4 + 3 * num_layer]
        h_all_ref = refs[5 + 3 * num_layer]
        Hp = h_all_ref.shape[-1]

        layer_in_ref = x_ref
        for layer in range(num_layer):
            wih_ref = layer_refs[3 * layer + 0]
            whh_ref = layer_refs[3 * layer + 1]
            b_ref = layer_refs[3 * layer + 2]
            cdt = wih_ref.dtype  # MXU input dtype (f32 or bf16)

            # (1) Time-parallel input projection: one big MXU GEMM over all
            #     T*Bp rows, hoisted off the serial critical path.
            xproj_ref[...] = (
                jnp.dot(layer_in_ref[...].astype(cdt), wih_ref[...],
                        preferred_element_type=jnp.float32)
                + b_ref[...])

            # (2) Sequential recurrence: only h @ W_hh^T + tanh per step.
            #     Row offsets are multiples of Bp (itself a multiple of 8), so
            #     the dynamic sublane slices stay tile-aligned.
            def step(t, h_prev, whh_ref=whh_ref, cdt=cdt):
                row = pl.multiple_of(t * Bp, Bp)
                pre = xproj_ref[pl.ds(row, Bp), :] + jnp.dot(
                    h_prev.astype(cdt), whh_ref[...],
                    preferred_element_type=jnp.float32)
                h_new = jnp.tanh(pre)
                h_all_ref[pl.ds(row, Bp), :] = h_new
                return h_new

            lax.fori_loop(0, T, step, jnp.zeros((Bp, Hp), jnp.float32))
            layer_in_ref = h_all_ref  # next layer consumes VMEM-resident h

        # (3) Fused FC + sigmoid epilogue on the resident hidden states,
        #     written as a lane-dense (T*Bp, Qp) slab.
        cdt = wfc_ref.dtype
        logits = jnp.dot(h_all_ref[...].astype(cdt), wfc_ref[...],
                         preferred_element_type=jnp.float32) + bfc_ref[...]
        out_ref[...] = jax.nn.sigmoid(logits)

    return kernel


# ------------------------------ param preparation ------------------------------
def prepare_params(params, compute_dtype=jnp.float32):
    """Pre-transpose weights, pre-add biases and zero-pad H/Q to multiples of
    128 (lane-dense).  Run once, outside the per-call forward path.
    compute_dtype=jnp.bfloat16 targets the v6e/v7x bf16 MXU (biases, hidden
    state and accumulation stay f32)."""
    w_fc, b_fc = params["fc"]
    H = params["rnn"][0][0].shape[0]
    Q = w_fc.shape[0]
    Hp = _round_up(H, 128)
    Qp = _round_up(Q, 128)

    layers = []
    for li, (w_ih, w_hh, b_ih, b_hh) in enumerate(params["rnn"]):
        in_sz = w_ih.shape[1]
        in_p = in_sz if li == 0 else Hp
        wih_t = jnp.zeros((in_p, Hp), jnp.float32).at[:in_sz, :H].set(
            jnp.asarray(w_ih, jnp.float32).T)
        whh_t = jnp.zeros((Hp, Hp), jnp.float32).at[:H, :H].set(
            jnp.asarray(w_hh, jnp.float32).T)
        b = jnp.zeros((1, Hp), jnp.float32).at[0, :H].set(
            jnp.asarray(b_ih + b_hh, jnp.float32))
        layers.append((wih_t.astype(compute_dtype),
                       whh_t.astype(compute_dtype),
                       b))

    wfc_t = jnp.zeros((Hp, Qp), jnp.float32).at[:H, :Q].set(
        jnp.asarray(w_fc, jnp.float32).T).astype(compute_dtype)
    bfc = jnp.zeros((1, Qp), jnp.float32).at[0, :Q].set(
        jnp.asarray(b_fc, jnp.float32))

    return {"layers": layers, "wfc_t": wfc_t, "bfc": bfc,
            "H": H, "Q": Q, "Hp": Hp, "Qp": Qp,
            "num_layer": len(params["rnn"])}


# --------------------------------- KT forward ----------------------------------
def kt_forward(prepared, x_btf):
    """x_btf: (B, T, 2*n_question) -> pred (B, T, n_question)."""
    B, T, I = x_btf.shape
    Hp, Qp, Q = prepared["Hp"], prepared["Qp"], prepared["Q"]
    num_layer = prepared["num_layer"]
    Bp = _round_up(B, 8)  # sublane-aligned batch tile

    x = x_btf.astype(jnp.float32)
    if Bp != B:
        x = jnp.pad(x, ((0, Bp - B), (0, 0), (0, 0)))
    # time-major flattened rows: row t*Bp + b  <->  (time t, sequence b)
    x_tm = jnp.transpose(x, (1, 0, 2)).reshape(T * Bp, I)
    # TODO(synk): the batch-first <-> time-major relayouts of x and of the
    # output could be folded into the kernel DMAs once they become measurable.

    weight_args = []
    for (wih_t, whh_t, b) in prepared["layers"]:
        weight_args += [wih_t, whh_t, b]
    weight_args += [prepared["wfc_t"], prepared["bfc"]]
    n_in = 1 + len(weight_args)

    out2d = pl.pallas_call(
        _make_kt_kernel(T, Bp, num_layer),
        out_shape=jax.ShapeDtypeStruct((T * Bp, Qp), jnp.float32),
        in_specs=[pl.BlockSpec(memory_space=pltpu.MemorySpace.VMEM)] * n_in,
        out_specs=pl.BlockSpec(memory_space=pltpu.MemorySpace.VMEM),
        scratch_shapes=[pltpu.VMEM((T * Bp, Hp), jnp.float32),   # xproj
                        pltpu.VMEM((T * Bp, Hp), jnp.float32)],  # h_all
        compiler_params=pltpu.CompilerParams(
            vmem_limit_bytes=64 * 1024 * 1024),
    )(x_tm, *weight_args)

    # (T*Bp, Qp) -> (B, T, Q) batch-first, dropping batch/lane padding.
    return out2d.reshape(T, Bp, Qp)[:, :B, :Q].transpose(1, 0, 2)


# --------------------------- pure-JAX reference check ---------------------------
def kt_reference(params, x_btf):
    B = x_btf.shape[0]
    h = jnp.transpose(x_btf, (1, 0, 2)).astype(jnp.float32)    # (T, B, F)
    for (w_ih, w_hh, b_ih, b_hh) in params["rnn"]:
        H = w_ih.shape[0]

        def step(h_prev, x_t, w_ih=w_ih, w_hh=w_hh, b_ih=b_ih, b_hh=b_hh):
            h_new = jnp.tanh(x_t @ w_ih.T + h_prev @ w_hh.T + b_ih + b_hh)
            return h_new, h_new

        _, h = lax.scan(step, jnp.zeros((B, H), jnp.float32), h)
    w_fc, b_fc = params["fc"]
    logits = h @ w_fc.T + b_fc
    return jax.nn.sigmoid(logits).transpose(1, 0, 2)


# ---------------------------------- param init ----------------------------------
def init_params(key, n_question, hidden_size, num_layer):
    input_size = n_question * 2
    scale = 1.0 / jnp.sqrt(hidden_size)
    rnn = []
    for layer in range(num_layer):
        in_sz = input_size if layer == 0 else hidden_size
        key, k1, k2, k3, k4 = jax.random.split(key, 5)
        rnn.append((
            jax.random.uniform(k1, (hidden_size, in_sz), jnp.float32, -scale, scale),
            jax.random.uniform(k2, (hidden_size, hidden_size), jnp.float32, -scale, scale),
            jax.random.uniform(k3, (hidden_size,), jnp.float32, -scale, scale),
            jax.random.uniform(k4, (hidden_size,), jnp.float32, -scale, scale),
        ))
    key, k1, k2 = jax.random.split(key, 3)
    fc = (
        jax.random.uniform(k1, (n_question, hidden_size), jnp.float32, -scale, scale),
        jax.random.uniform(k2, (n_question,), jnp.float32, -scale, scale),
    )
    return {"rnn": rnn, "fc": fc}


if __name__ == "__main__":
    n_question, hidden_size, num_layer = 16, 32, 2
    B, T = 2, 8

    key = jax.random.PRNGKey(0)
    key, pkey, xkey = jax.random.split(key, 3)
    params = init_params(pkey, n_question, hidden_size, num_layer)
    x = jax.random.normal(xkey, (B, T, n_question * 2), jnp.float32)

    prepared = prepare_params(params)          # hoisted out of the forward path
    fwd = jax.jit(lambda xx: kt_forward(prepared, xx))

    pred = jax.block_until_ready(fwd(x))
    ref = jax.block_until_ready(kt_reference(params, x))

    assert pred.shape == (B, T, n_question), pred.shape
    assert jnp.allclose(pred, ref, atol=1e-4, rtol=1e-4), \
        f"max abs err {jnp.max(jnp.abs(pred - ref))}"
    print("KERNEL_OK")
</pallas_src>

<mosaic_0001>
module attributes {stable_mosaic.version = 11 : i64} {
  func.func @kernel(%arg0: memref<64x32xf32, #tpu.memory_space<vmem>>, %arg1: memref<32x128xf32, #tpu.memory_space<vmem>>, %arg2: memref<128x128xf32, #tpu.memory_space<vmem>>, %arg3: memref<1x128xf32, #tpu.memory_space<vmem>>, %arg4: memref<128x128xf32, #tpu.memory_space<vmem>>, %arg5: memref<128x128xf32, #tpu.memory_space<vmem>>, %arg6: memref<1x128xf32, #tpu.memory_space<vmem>>, %arg7: memref<128x128xf32, #tpu.memory_space<vmem>>, %arg8: memref<1x128xf32, #tpu.memory_space<vmem>>, %arg9: memref<64x128xf32, #tpu.memory_space<vmem>>, %arg10: memref<64x128xf32, #tpu.memory_space<vmem>>, %arg11: memref<64x128xf32, #tpu.memory_space<vmem>>) attributes {dimension_semantics = [], scalar_prefetch = 0 : i64, scratch_operands = 2 : i64, tpu.core_type = #tpu.core_type<tc>} {
    %c0 = arith.constant 0 : index
    %c0_0 = arith.constant 0 : index
    %0 = vector.load %arg0[%c0, %c0_0] : memref<64x32xf32, #tpu.memory_space<vmem>>, vector<64x32xf32>
    %c0_1 = arith.constant 0 : index
    %c0_2 = arith.constant 0 : index
    %1 = vector.load %arg1[%c0_1, %c0_2] : memref<32x128xf32, #tpu.memory_space<vmem>>, vector<32x128xf32>
    %cst = arith.constant dense<0.000000e+00> : vector<64x128xf32>
    %2 = tpu.matmul %0, %1, %cst {dimension_numbers = #tpu.dot_dimension_numbers<[1], [0], [0], [1], [0, 0, 1, 1], [], []>} : vector<64x32xf32>, vector<32x128xf32>, vector<64x128xf32> -> vector<64x128xf32>
    %c0_3 = arith.constant 0 : index
    %c0_4 = arith.constant 0 : index
    %3 = vector.load %arg3[%c0_3, %c0_4] : memref<1x128xf32, #tpu.memory_space<vmem>>, vector<1x128xf32>
    %4 = vector.broadcast %3 : vector<1x128xf32> to vector<64x128xf32>
    %5 = arith.addf %2, %4 : vector<64x128xf32>
    %c0_5 = arith.constant 0 : index
    %c0_6 = arith.constant 0 : index
    %6 = vector.load %arg10[%c0_5, %c0_6] : memref<64x128xf32, #tpu.memory_space<vmem>>, vector<64x128xf32>
    tpu.vector_store %arg10[%c0_5, %c0_6], %5 {strides = array<i32>} : memref<64x128xf32, #tpu.memory_space<vmem>>, vector<64x128xf32>,
    %cst_7 = arith.constant 0.000000e+00 : f32
    %7 = vector.broadcast %cst_7 : f32 to vector<8x128xf32>
    %c0_i32 = arith.constant 0 : i32
    %c8_i32 = arith.constant 8 : i32
    %8 = arith.addi %c0_i32, %c8_i32 : i32
    %c1_i32 = arith.constant 1 : i32
    %9 = scf.for %arg12 = %c0_i32 to %8 step %c1_i32 iter_args(%arg13 = %7) -> (vector<8x128xf32>)  : i32 {
      %c8_i32_33 = arith.constant 8 : i32
      %32 = arith.muli %arg12, %c8_i32_33 : i32
      %33 = tpu.assume_multiple %32, 8 : i32
      %34 = arith.index_cast %33 : i32 to index
      %c0_34 = arith.constant 0 : index
      %35 = vector.load %arg10[%34, %c0_34] : memref<64x128xf32, #tpu.memory_space<vmem>>, vector<8x128xf32>
      %c0_35 = arith.constant 0 : index
      %c0_36 = arith.constant 0 : index
      %36 = vector.load %arg2[%c0_35, %c0_36] : memref<128x128xf32, #tpu.memory_space<vmem>>, vector<128x128xf32>
      %cst_37 = arith.constant dense<0.000000e+00> : vector<8x128xf32>
      %37 = tpu.matmul %arg13, %36, %cst_37 {dimension_numbers = #tpu.dot_dimension_numbers<[1], [0], [0], [1], [0, 0, 1, 1], [], []>} : vector<8x128xf32>, vector<128x128xf32>, vector<8x128xf32> -> vector<8x128xf32>
      %38 = arith.addf %35, %37 : vector<8x128xf32>
      %39 = math.tanh %38 : vector<8x128xf32>
      %40 = arith.index_cast %33 : i32 to index
      %c0_38 = arith.constant 0 : index
      %41 = vector.load %arg11[%40, %c0_38] : memref<64x128xf32, #tpu.memory_space<vmem>>, vector<8x128xf32>
      tpu.vector_store %arg11[%40, %c0_38], %39 {strides = array<i32>} : memref<64x128xf32, #tpu.memory_space<vmem>>, vector<8x128xf32>,
      scf.yield %39 : vector<8x128xf32>
    }
    %c8_i32_8 = arith.constant 8 : i32
    %c0_9 = arith.constant 0 : index
    %c0_10 = arith.constant 0 : index
    %10 = vector.load %arg11[%c0_9, %c0_10] : memref<64x128xf32, #tpu.memory_space<vmem>>, vector<64x128xf32>
    %c0_11 = arith.constant 0 : index
    %c0_12 = arith.constant 0 : index
    %11 = vector.load %arg4[%c0_11, %c0_12] : memref<128x128xf32, #tpu.memory_space<vmem>>, vector<128x128xf32>
    %cst_13 = arith.constant dense<0.000000e+00> : vector<64x128xf32>
    %12 = tpu.matmul %10, %11, %cst_13 {dimension_numbers = #tpu.dot_dimension_numbers<[1], [0], [0], [1], [0, 0, 1, 1], [], []>} : vector<64x128xf32>, vector<128x128xf32>, vector<64x128xf32> -> vector<64x128xf32>
    %c0_14 = arith.constant 0 : index
    %c0_15 = arith.constant 0 : index
    %13 = vector.load %arg6[%c0_14, %c0_15] : memref<1x128xf32, #tpu.memory_space<vmem>>, vector<1x128xf32>
    %14 = vector.broadcast %13 : vector<1x128xf32> to vector<64x128xf32>
    %15 = arith.addf %12, %14 : vector<64x128xf32>
    %c0_16 = arith.constant 0 : index
    %c0_17 = arith.constant 0 : index
    %16 = vector.load %arg10[%c0_16, %c0_17] : memref<64x128xf32, #tpu.memory_space<vmem>>, vector<64x128xf32>
    tpu.vector_store %arg10[%c0_16, %c0_17], %15 {strides = array<i32>} : memref<64x128xf32, #tpu.memory_space<vmem>>, vector<64x128xf32>,
    %cst_18 = arith.constant 0.000000e+00 : f32
    %17 = vector.broadcast %cst_18 : f32 to vector<8x128xf32>
    %c0_i32_19 = arith.constant 0 : i32
    %c8_i32_20 = arith.constant 8 : i32
    %18 = arith.addi %c0_i32_19, %c8_i32_20 : i32
    %c1_i32_21 = arith.constant 1 : i32
    %19 = scf.for %arg12 = %c0_i32_19 to %18 step %c1_i32_21 iter_args(%arg13 = %17) -> (vector<8x128xf32>)  : i32 {
      %c8_i32_33 = arith.constant 8 : i32
      %32 = arith.muli %arg12, %c8_i32_33 : i32
      %33 = tpu.assume_multiple %32, 8 : i32
      %34 = arith.index_cast %33 : i32 to index
      %c0_34 = arith.constant 0 : index
      %35 = vector.load %arg10[%34, %c0_34] : memref<64x128xf32, #tpu.memory_space<vmem>>, vector<8x128xf32>
      %c0_35 = arith.constant 0 : index
      %c0_36 = arith.constant 0 : index
      %36 = vector.load %arg5[%c0_35, %c0_36] : memref<128x128xf32, #tpu.memory_space<vmem>>, vector<128x128xf32>
      %cst_37 = arith.constant dense<0.000000e+00> : vector<8x128xf32>
      %37 = tpu.matmul %arg13, %36, %cst_37 {dimension_numbers = #tpu.dot_dimension_numbers<[1], [0], [0], [1], [0, 0, 1, 1], [], []>} : vector<8x128xf32>, vector<128x128xf32>, vector<8x128xf32> -> vector<8x128xf32>
      %38 = arith.addf %35, %37 : vector<8x128xf32>
      %39 = math.tanh %38 : vector<8x128xf32>
      %40 = arith.index_cast %33 : i32 to index
      %c0_38 = arith.constant 0 : index
      %41 = vector.load %arg11[%40, %c0_38] : memref<64x128xf32, #tpu.memory_space<vmem>>, vector<8x128xf32>
      tpu.vector_store %arg11[%40, %c0_38], %39 {strides = array<i32>} : memref<64x128xf32, #tpu.memory_space<vmem>>, vector<8x128xf32>,
      scf.yield %39 : vector<8x128xf32>
    }
    %c8_i32_22 = arith.constant 8 : i32
    %c0_23 = arith.constant 0 : index
    %c0_24 = arith.constant 0 : index
    %20 = vector.load %arg11[%c0_23, %c0_24] : memref<64x128xf32, #tpu.memory_space<vmem>>, vector<64x128xf32>
    %c0_25 = arith.constant 0 : index
    %c0_26 = arith.constant 0 : index
    %21 = vector.load %arg7[%c0_25, %c0_26] : memref<128x128xf32, #tpu.memory_space<vmem>>, vector<128x128xf32>
    %cst_27 = arith.constant dense<0.000000e+00> : vector<64x128xf32>
    %22 = tpu.matmul %20, %21, %cst_27 {dimension_numbers = #tpu.dot_dimension_numbers<[1], [0], [0], [1], [0, 0, 1, 1], [], []>} : vector<64x128xf32>, vector<128x128xf32>, vector<64x128xf32> -> vector<64x128xf32>
    %c0_28 = arith.constant 0 : index
    %c0_29 = arith.constant 0 : index
    %23 = vector.load %arg8[%c0_28, %c0_29] : memref<1x128xf32, #tpu.memory_space<vmem>>, vector<1x128xf32>
    %24 = vector.broadcast %23 : vector<1x128xf32> to vector<64x128xf32>
    %25 = arith.addf %22, %24 : vector<64x128xf32>
    %26 = arith.negf %25 : vector<64x128xf32>
    %27 = math.exp %26 : vector<64x128xf32>
    %cst_30 = arith.constant 1.000000e+00 : f32
    %28 = vector.broadcast %cst_30 : f32 to vector<64x128xf32>
    %29 = arith.addf %28, %27 : vector<64x128xf32>
    %30 = arith.divf %28, %29 : vector<64x128xf32>
    %c0_31 = arith.constant 0 : index
    %c0_32 = arith.constant 0 : index
    %31 = vector.load %arg9[%c0_31, %c0_32] : memref<64x128xf32, #tpu.memory_space<vmem>>, vector<64x128xf32>
    tpu.vector_store %arg9[%c0_31, %c0_32], %30 {strides = array<i32>} : memref<64x128xf32, #tpu.memory_space<vmem>>, vector<64x128xf32>,
    return
  }
}

</mosaic_0001>

<llo_original>
// kernel: _lambda_.1
$region0: #{_lambda_.1}
  #allocation0 [shape = 'u32[]', space=smem, size = 0x4, offset = 0x4, fixed_abs, tag = 'smem constant byte address 0x4 - core index']
  #allocation1 [shape = 'u32[144,128]{1,0:T(1,128)}', space=vmem, size = 0x12000, scoped, tag = 'internal scratch']
  #allocation2 [shape = 'f32[64,128]{1,0:T(8,128)}', space=vmem, size = 0x8000, scoped, tag = 'scratch operand']
  #allocation3 [shape = 'f32[64,128]{1,0:T(8,128)}', space=vmem, size = 0x8000, scoped, tag = 'scratch operand']
  %s0 = inlined_call_operand.vmem [shape: f32[64,32], index: 0, kind: input, shape index: {}]
  %s1 = inlined_call_operand.vmem [shape: f32[32,128], index: 1, kind: input, shape index: {}]
  %s2 = inlined_call_operand.hbm [shape: f32[128,128], index: 2, kind: input, shape index: {}]
  %s3 = inlined_call_operand.vmem [shape: f32[1,128], index: 3, kind: input, shape index: {}]
  %s4 = inlined_call_operand.hbm [shape: f32[128,128], index: 4, kind: input, shape index: {}]
  %s5 = inlined_call_operand.hbm [shape: f32[128,128], index: 5, kind: input, shape index: {}]
  %s6 = inlined_call_operand.vmem [shape: f32[1,128], index: 6, kind: input, shape index: {}]
  %s7 = inlined_call_operand.vmem [shape: f32[128,128], index: 7, kind: input, shape index: {}]
  %s8 = inlined_call_operand.vmem [shape: f32[1,128], index: 8, kind: input, shape index: {}]
  %s9 = inlined_call_operand.vmem [shape: f32[64,128], index: 9, kind: output, shape index: {}]
  %s10 = sld [smem:[#allocation0]]
  $region72: #{_lambda_.1} parent=0
    _
  %s12 = ssub.s32 1, %s10
  %s13 = scalar_select 0, %s12, %s10
  $region1: #{_lambda_.1} parent=0
    #allocation4 [shape = 'u8[65536]{0}', space=vmem, size = 0x10000, scoped, tag = 'input window, operand 2, single buffered']
    #allocation5 [shape = 's32[1]{0}', space=sflag, size = 0x4, scoped, tag = 'scoped memory for _lambda_.1']
    #allocation6 [shape = 'u8[65536]{0}', space=vmem, size = 0x10000, scoped, tag = 'input window, operand 4, single buffered']
    #allocation7 [shape = 's32[1]{0}', space=sflag, size = 0x4, scoped, tag = 'scoped memory for _lambda_.1']
    #allocation8 [shape = 'u8[65536]{0}', space=vmem, size = 0x10000, scoped, tag = 'input window, operand 5, single buffered']
    %14 = vsyncpa [#allocation5], 0
    %15 = vsyncpa [#allocation7], 0
    // Predicated region
    $region2: #{_lambda_.1} parent=1 // pred_check
      _
    $region3: #{_lambda_.1} parent=1 // pred_check_branch
      %17 = sbr.rel (0) target = $region5
    $region4: #{_lambda_.1} parent=1 // pred_region
      _
    $region5: #{_lambda_.1} parent=1 // pred_fallthru
      _
    // Predicated region
    $region6: #{_lambda_.1} parent=1 // pred_check
      _
    $region7: #{_lambda_.1} parent=1 // pred_check_branch
      %19 = sbr.rel (0) target = $region9
    $region8: #{_lambda_.1} parent=1 // pred_region
      _
    $region9: #{_lambda_.1} parent=1 // pred_fallthru
      _
    // Predicated region
    $region10: #{_lambda_.1} parent=1 // pred_check
      _
    $region11: #{_lambda_.1} parent=1 // pred_check_branch
      %21 = sbr.rel (0) target = $region13
    $region12: #{_lambda_.1} parent=1 // pred_region
      %s23 = ssub.s32 2048, 2048
      %24 = vsyncadd [#allocation5], %s23
      %s25 = sshll.u32 [#allocation4], 4
      %s26 = int_to_ptr.vmem [resolvable:$true] %s25
      %31 = dma.hbm_to_vmem [thread:$0]  %s2, 2048, %s26, [#allocation5], 128, 128, 8
    $region13: #{_lambda_.1} parent=1 // pred_fallthru
      _
    // Predicated region
    $region14: #{_lambda_.1} parent=1 // pred_check
      _
    $region15: #{_lambda_.1} parent=1 // pred_check_branch
      %33 = sbr.rel (0) target = $region17
    $region16: #{_lambda_.1} parent=1 // pred_region
      _
    $region17: #{_lambda_.1} parent=1 // pred_fallthru
      _
    // Predicated region
    $region18: #{_lambda_.1} parent=1 // pred_check
      _
    $region19: #{_lambda_.1} parent=1 // pred_check_branch
      %35 = sbr.rel (0) target = $region21
    $region20: #{_lambda_.1} parent=1 // pred_region
      %s37 = ssub.s32 2048, 2048
      %38 = vsyncadd [#allocation7], %s37
      %s39 = sshll.u32 [#allocation6], 4
      %s40 = int_to_ptr.vmem [resolvable:$true] %s39
      %45 = dma.hbm_to_vmem [thread:$0]  %s4, 2048, %s40, [#allocation7], 128, 128, 8
    $region21: #{_lambda_.1} parent=1 // pred_fallthru
      _
    // Predicated region
    $region22: #{_lambda_.1} parent=1 // pred_check
      _
    $region23: #{_lambda_.1} parent=1 // pred_check_branch
      %47 = sbr.rel (0) target = $region25
    $region24: #{_lambda_.1} parent=1 // pred_region
      %s49 = ssub.s32 2048, 2048
      %50 = vsyncadd [#allocation7], %s49
      %s51 = sshll.u32 [#allocation8], 4
      %s52 = int_to_ptr.vmem [resolvable:$true] %s51
      %57 = dma.hbm_to_vmem [thread:$0]  %s5, 2048, %s52, [#allocation7], 128, 128, 8
    $region25: #{_lambda_.1} parent=1 // pred_fallthru
      _
    // Predicated region
    $region26: #{_lambda_.1} parent=1 // pred_check
      _
    $region27: #{_lambda_.1} parent=1 // pred_check_branch
      %59 = sbr.rel (0) target = $region29
    $region28: #{_lambda_.1} parent=1 // pred_region
      _
    $region29: #{_lambda_.1} parent=1 // pred_fallthru
      _
    // Predicated region
    $region30: #{_lambda_.1} parent=1 // pred_check
      _
    $region31: #{_lambda_.1} parent=1 // pred_check_branch
      %61 = sbr.rel (0) target = $region33
    $region32: #{_lambda_.1} parent=1 // pred_region
      _
    $region33: #{_lambda_.1} parent=1 // pred_fallthru
      _
    // Predicated region
    $region34: #{_lambda_.1} parent=1 // pred_check
      _
    $region35: #{_lambda_.1} parent=1 // pred_check_branch
      %63 = sbr.rel (0) target = $region37
    $region36: #{_lambda_.1} parent=1 // pred_region
      _
    $region37: #{_lambda_.1} parent=1 // pred_fallthru
      _
    // Predicated region
    $region38: #{_lambda_.1} parent=1 // pred_check
      _
    $region39: #{_lambda_.1} parent=1 // pred_check_branch
      %65 = sbr.rel (0) target = $region41
    $region40: #{_lambda_.1} parent=1 // pred_region
      %66 = dma.done [#allocation5], 2048
    $region41: #{_lambda_.1} parent=1 // pred_fallthru
      _
    // Predicated region
    $region42: #{_lambda_.1} parent=1 // pred_check
      _
    $region43: #{_lambda_.1} parent=1 // pred_check_branch
      %68 = sbr.rel (0) target = $region45
    $region44: #{_lambda_.1} parent=1 // pred_region
      %69 = dma.done [#allocation7], 2048
    $region45: #{_lambda_.1} parent=1 // pred_fallthru
      _
    // Predicated region
    $region46: #{_lambda_.1} parent=1 // pred_check
      _
    $region47: #{_lambda_.1} parent=1 // pred_check_branch
      %71 = sbr.rel (0) target = $region49
    $region48: #{_lambda_.1} parent=1 // pred_region
      %72 = dma.done [#allocation7], 2048
    $region49: #{_lambda_.1} parent=1 // pred_fallthru
      _
    %v73 = vld [vmem:[%s0] sm:$0xff]
    %v74 = vld [vmem:[%s0 + $0x8] sm:$0xff]
    %v75 = vld [vmem:[%s0 + $0x10] sm:$0xff]
    %v76 = vld [vmem:[%s0 + $0x18] sm:$0xff]
    %v77 = vld [vmem:[%s0 + $0x20] sm:$0xff]
    %v78 = vld [vmem:[%s0 + $0x28] sm:$0xff]
    %v79 = vld [vmem:[%s0 + $0x30] sm:$0xff]
    %v80 = vld [vmem:[%s0 + $0x38] sm:$0xff]
    %v81 = vld [vmem:[%s1] sm:$0xff]
    %v82 = vld [vmem:[%s1 + $0x8] sm:$0xff]
    %v83 = vld [vmem:[%s1 + $0x10] sm:$0xff]
    %v84 = vld [vmem:[%s1 + $0x18] sm:$0xff]
    %v85 = vld [vmem:[%s3] sm:$0x1]
    %v87 = vlaneseq
    %v88 = vshrl.u32 %v87, 7
    %v89 = vsub.s32 0, %v88
    %v90 = vrot.slane %v85, %v89
    %vm92 = vcmask 261120
    %v94 = vsel %vm92, %v73, 0
    %v97 = vsel %vm92, %v74, 0
    %v100 = vsel %vm92, %v75, 0
    %v103 = vsel %vm92, %v76, 0
    %v106 = vsel %vm92, %v77, 0
    %v109 = vsel %vm92, %v78, 0
    %v112 = vsel %vm92, %v79, 0
    %v115 = vsel %vm92, %v80, 0
    %117 = vmatprep.subr.mxu0 0.0
    %118 = vmatpush1.msra.mxu0 0.0
    %119 = vmatprep.subr.mxu0 0.0
    %120 = vmatpush1.msra.mxu0 0.0
    %121 = vmatprep.subr.mxu0 0.0
    %122 = vmatpush1.msra.mxu0 0.0
    %123 = vmatprep.subr.mxu0 0.0
    %124 = vmatpush1.msra.mxu0 0.0
    %125 = vmatprep.subr.mxu0 0.0
    %126 = vmatpush1.msra.mxu0 0.0
    %127 = vmatprep.subr.mxu0 0.0
    %128 = vmatpush1.msra.mxu0 0.0
    %129 = vmatprep.subr.mxu0 0.0
    %130 = vmatpush1.msra.mxu0 0.0
    %131 = vmatprep.subr.mxu0 0.0
    %132 = vmatpush1.msra.mxu0 0.0
    %133 = vmatprep.subr.mxu0 0.0
    %134 = vmatpush1.msra.mxu0 0.0
    %135 = vmatprep.subr.mxu0 0.0
    %136 = vmatpush1.msra.mxu0 0.0
    %137 = vmatprep.subr.mxu0 0.0
    %138 = vmatpush1.msra.mxu0 0.0
    %139 = vmatprep.subr.mxu0 0.0
    %140 = vmatpush1.msra.mxu0 0.0
    %141 = vmatprep.subr.mxu0 0.0
    %142 = vmatpush1.msra.mxu0 %v84
    %143 = vmatprep.subr.mxu0 0.0
    %144 = vmatpush1.msra.mxu0 %v83
    %145 = vmatprep.subr.mxu0 0.0
    %146 = vmatpush1.msra.mxu0 %v82
    %147 = vmatprep.subr.mxu0 0.0
    %148 = vmatpush1.msra.mxu0 %v81
    %149 = vmatprep.subr.mxu0 0.0
    %150 = vmatpush2.msra.mxu0 0.0
    %151 = vmatprep.subr.mxu0 0.0
    %152 = vmatpush2.msra.mxu0 0.0
    %153 = vmatprep.subr.mxu0 0.0
    %154 = vmatpush2.msra.mxu0 0.0
    %155 = vmatprep.subr.mxu0 0.0
    %156 = vmatpush2.msra.mxu0 0.0
    %157 = vmatprep.subr.mxu0 0.0
    %158 = vmatpush2.msra.mxu0 0.0
    %159 = vmatprep.subr.mxu0 0.0
    %160 = vmatpush2.msra.mxu0 0.0
    %161 = vmatprep.subr.mxu0 0.0
    %162 = vmatpush2.msra.mxu0 0.0
    %163 = vmatprep.subr.mxu0 0.0
    %164 = vmatpush2.msra.mxu0 0.0
    %165 = vmatprep.subr.mxu0 0.0
    %166 = vmatpush2.msra.mxu0 0.0
    %167 = vmatprep.subr.mxu0 0.0
    %168 = vmatpush2.msra.mxu0 0.0
    %169 = vmatprep.subr.mxu0 0.0
    %170 = vmatpush2.msra.mxu0 0.0
    %171 = vmatprep.subr.mxu0 0.0
    %172 = vmatpush2.msra.mxu0 0.0
    %173 = vmatprep.subr.mxu0 0.0
    %174 = vmatpush2.msra.mxu0 0.0
    %175 = vmatprep.subr.mxu0 0.0
    %176 = vmatpush2.msra.mxu0 0.0
    %177 = vmatprep.subr.mxu0 0.0
    %178 = vmatpush2.msra.mxu0 0.0
    %179 = vmatprep.subr.mxu0 0.0
    %180 = vmatpush2.msra.mxu0 0.0
    %181 = vmatprep.mubr.f32.mxu0 0.0
    %182 = vmatmul.mubr.f32.gmra.mxu0 %v94
    %v183 = vpop.f32.mrf.mxu0
    %v184 = vadd.f32 %v90, %v183
    %v185 = vpop.f32.mrf.mxu0
    %186 = vmatprep.mubr.f32.mxu0 0.0
    %187 = vmatmul.mubr.f32.gmra.mxu0 %v97
    %v188 = vpop.f32.mrf.mxu0
    %v189 = vadd.f32 %v90, %v188
    %v190 = vpop.f32.mrf.mxu0
    %191 = vmatprep.mubr.f32.mxu0 0.0
    %192 = vmatmul.mubr.f32.gmra.mxu0 %v100
    %v193 = vpop.f32.mrf.mxu0
    %v194 = vadd.f32 %v90, %v193
    %v195 = vpop.f32.mrf.mxu0
    %196 = vmatprep.mubr.f32.mxu0 0.0
    %197 = vmatmul.mubr.f32.gmra.mxu0 %v103
    %v198 = vpop.f32.mrf.mxu0
    %v199 = vadd.f32 %v90, %v198
    %v200 = vpop.f32.mrf.mxu0
    %201 = vmatprep.mubr.f32.mxu0 0.0
    %202 = vmatmul.mubr.f32.gmra.mxu0 %v106
    %v203 = vpop.f32.mrf.mxu0
    %v204 = vadd.f32 %v90, %v203
    %v205 = vpop.f32.mrf.mxu0
    %206 = vmatprep.mubr.f32.mxu0 0.0
    %207 = vmatmul.mubr.f32.gmra.mxu0 %v109
    %v208 = vpop.f32.mrf.mxu0
    %v209 = vadd.f32 %v90, %v208
    %v210 = vpop.f32.mrf.mxu0
    %211 = vmatprep.mubr.f32.mxu0 0.0
    %212 = vmatmul.mubr.f32.gmra.mxu0 %v112
    %v213 = vpop.f32.mrf.mxu0
    %v214 = vadd.f32 %v90, %v213
    %v215 = vpop.f32.mrf.mxu0
    %216 = vmatprep.mubr.f32.mxu0 0.0
    %217 = vmatmul.mubr.f32.gmra.mxu0 %v115
    %v218 = vpop.f32.mrf.mxu0
    %v219 = vadd.f32 %v90, %v218
    %v220 = vpop.f32.mrf.mxu0
    %221 = vdwg.mxu0
    %222 = vst [vmem:[#allocation2] sm:$0xff] %v184
    %223 = vst [vmem:[#allocation2 + $0x8] sm:$0xff] %v189
    %224 = vst [vmem:[#allocation2 + $0x10] sm:$0xff] %v194
    %225 = vst [vmem:[#allocation2 + $0x18] sm:$0xff] %v199
    %226 = vst [vmem:[#allocation2 + $0x20] sm:$0xff] %v204
    %227 = vst [vmem:[#allocation2 + $0x28] sm:$0xff] %v209
    %228 = vst [vmem:[#allocation2 + $0x30] sm:$0xff] %v214
    %229 = vst [vmem:[#allocation2 + $0x38] sm:$0xff] %v219
    loop: start=0, step=1, limit=8
    $region50: #{_lambda_.1} parent=1 // loop_pre_header
      _
    $region51: #{_lambda_.1} parent=1 // loop_header
      %s231 = sphi 0, %s235
      %p232 = scmp.ge.s32.totalorder %s231, 8
      %v236 = vphi 0.0, %v327
    $region52: #{_lambda_.1} parent=1 // loop_header_branch
      %234 = sbr.rel (%p232) target = $region56
    $region53: #{_lambda_.1} parent=1 // loop_body
      %s237 = smul.u32 %s231, 8
      %s238 = scalar_lea.vmem [#allocation2], %s237
      %v239 = vld [vmem:[%s238] sm:$0xff]
      %v240 = vld [vmem:[#allocation4] sm:$0xff]
      %v241 = vld [vmem:[#allocation4 + $0x8] sm:$0xff]
      %v242 = vld [vmem:[#allocation4 + $0x10] sm:$0xff]
      %v243 = vld [vmem:[#allocation4 + $0x18] sm:$0xff]
      %v244 = vld [vmem:[#allocation4 + $0x20] sm:$0xff]
      %v245 = vld [vmem:[#allocation4 + $0x28] sm:$0xff]
      %v246 = vld [vmem:[#allocation4 + $0x30] sm:$0xff]
      %v247 = vld [vmem:[#allocation4 + $0x38] sm:$0xff]
      %v248 = vld [vmem:[#allocation4 + $0x40] sm:$0xff]
      %v249 = vld [vmem:[#allocation4 + $0x48] sm:$0xff]
      %v250 = vld [vmem:[#allocation4 + $0x50] sm:$0xff]
      %v251 = vld [vmem:[#allocation4 + $0x58] sm:$0xff]
      %v252 = vld [vmem:[#allocation4 + $0x60] sm:$0xff]
      %v253 = vld [vmem:[#allocation4 + $0x68] sm:$0xff]
      %v254 = vld [vmem:[#allocation4 + $0x70] sm:$0xff]
      %v255 = vld [vmem:[#allocation4 + $0x78] sm:$0xff]
      %256 = vmatprep.subr.mxu0 0.0
      %257 = vmatpush1.msra.mxu0 %v255
      %258 = vmatprep.subr.mxu0 0.0
      %259 = vmatpush1.msra.mxu0 %v254
      %260 = vmatprep.subr.mxu0 0.0
      %261 = vmatpush1.msra.mxu0 %v253
      %262 = vmatprep.subr.mxu0 0.0
      %263 = vmatpush1.msra.mxu0 %v252
      %264 = vmatprep.subr.mxu0 0.0
      %265 = vmatpush1.msra.mxu0 %v251
      %266 = vmatprep.subr.mxu0 0.0
      %267 = vmatpush1.msra.mxu0 %v250
      %268 = vmatprep.subr.mxu0 0.0
      %269 = vmatpush1.msra.mxu0 %v249
      %270 = vmatprep.subr.mxu0 0.0
      %271 = vmatpush1.msra.mxu0 %v248
      %272 = vmatprep.subr.mxu0 0.0
      %273 = vmatpush1.msra.mxu0 %v247
      %274 = vmatprep.subr.mxu0 0.0
      %275 = vmatpush1.msra.mxu0 %v246
      %276 = vmatprep.subr.mxu0 0.0
      %277 = vmatpush1.msra.mxu0 %v245
      %278 = vmatprep.subr.mxu0 0.0
      %279 = vmatpush1.msra.mxu0 %v244
      %280 = vmatprep.subr.mxu0 0.0
      %281 = vmatpush1.msra.mxu0 %v243
      %282 = vmatprep.subr.mxu0 0.0
      %283 = vmatpush1.msra.mxu0 %v242
      %284 = vmatprep.subr.mxu0 0.0
      %285 = vmatpush1.msra.mxu0 %v241
      %286 = vmatprep.subr.mxu0 0.0
      %287 = vmatpush1.msra.mxu0 %v240
      %288 = vmatprep.subr.mxu0 0.0
      %289 = vmatpush2.msra.mxu0 0.0
      %290 = vmatprep.subr.mxu0 0.0
      %291 = vmatpush2.msra.mxu0 0.0
      %292 = vmatprep.subr.mxu0 0.0
      %293 = vmatpush2.msra.mxu0 0.0
      %294 = vmatprep.subr.mxu0 0.0
      %295 = vmatpush2.msra.mxu0 0.0
      %296 = vmatprep.subr.mxu0 0.0
      %297 = vmatpush2.msra.mxu0 0.0
      %298 = vmatprep.subr.mxu0 0.0
      %299 = vmatpush2.msra.mxu0 0.0
      %300 = vmatprep.subr.mxu0 0.0
      %301 = vmatpush2.msra.mxu0 0.0
      %302 = vmatprep.subr.mxu0 0.0
      %303 = vmatpush2.msra.mxu0 0.0
      %304 = vmatprep.subr.mxu0 0.0
      %305 = vmatpush2.msra.mxu0 0.0
      %306 = vmatprep.subr.mxu0 0.0
      %307 = vmatpush2.msra.mxu0 0.0
      %308 = vmatprep.subr.mxu0 0.0
      %309 = vmatpush2.msra.mxu0 0.0
      %310 = vmatprep.subr.mxu0 0.0
      %311 = vmatpush2.msra.mxu0 0.0
      %312 = vmatprep.subr.mxu0 0.0
      %313 = vmatpush2.msra.mxu0 0.0
      %314 = vmatprep.subr.mxu0 0.0
      %315 = vmatpush2.msra.mxu0 0.0
      %316 = vmatprep.subr.mxu0 0.0
      %317 = vmatpush2.msra.mxu0 0.0
      %318 = vmatprep.subr.mxu0 0.0
      %319 = vmatpush2.msra.mxu0 0.0
      %320 = vmatprep.mubr.f32.mxu0 0.0
      %321 = vmatmul.mubr.f32.gmra.mxu0 %v236
      %v322 = vpop.f32.mrf.mxu0
      %v323 = vadd.f32 0.0, %v322
      %v324 = vpop.f32.mrf.mxu0
      %325 = vdwg.mxu0
      %v326 = vadd.f32 %v239, %v323
      %v327 = vtanh.pop %v326
      %s328 = scalar_lea.vmem [#allocation3], %s237
      %329 = vst [vmem:[%s328] sm:$0xff] %v327
    $region54: #{_lambda_.1} parent=1 // loop_footer
      %s235 = sadd.s32 1, %s231
    $region55: #{_lambda_.1} parent=1 // loop_footer_branch
      %230 = sbr.rel target = $region51
    $region56: #{_lambda_.1} parent=1 // loop_exit
      _
    %v330 = vld [vmem:[#allocation3] sm:$0xff]
    %v331 = vld [vmem:[#allocation3 + $0x8] sm:$0xff]
    %v332 = vld [vmem:[#allocation3 + $0x10] sm:$0xff]
    %v333 = vld [vmem:[#allocation3 + $0x18] sm:$0xff]
    %v334 = vld [vmem:[#allocation3 + $0x20] sm:$0xff]
    %v335 = vld [vmem:[#allocation3 + $0x28] sm:$0xff]
    %v336 = vld [vmem:[#allocation3 + $0x30] sm:$0xff]
    %v337 = vld [vmem:[#allocation3 + $0x38] sm:$0xff]
    %v338 = vld [vmem:[#allocation6] sm:$0xff]
    %v339 = vld [vmem:[#allocation6 + $0x8] sm:$0xff]
    %v340 = vld [vmem:[#allocation6 + $0x10] sm:$0xff]
    %v341 = vld [vmem:[#allocation6 + $0x18] sm:$0xff]
    %v342 = vld [vmem:[#allocation6 + $0x20] sm:$0xff]
    %v343 = vld [vmem:[#allocation6 + $0x28] sm:$0xff]
    %v344 = vld [vmem:[#allocation6 + $0x30] sm:$0xff]
    %v345 = vld [vmem:[#allocation6 + $0x38] sm:$0xff]
    %v346 = vld [vmem:[#allocation6 + $0x40] sm:$0xff]
    %v347 = vld [vmem:[#allocation6 + $0x48] sm:$0xff]
    %v348 = vld [vmem:[#allocation6 + $0x50] sm:$0xff]
    %v349 = vld [vmem:[#allocation6 + $0x58] sm:$0xff]
    %v350 = vld [vmem:[#allocation6 + $0x60] sm:$0xff]
    %v351 = vld [vmem:[#allocation6 + $0x68] sm:$0xff]
    %v352 = vld [vmem:[#allocation6 + $0x70] sm:$0xff]
    %v353 = vld [vmem:[#allocation6 + $0x78] sm:$0xff]
    %v354 = vld [vmem:[%s6] sm:$0x1]
    %v356 = vlaneseq
    %v357 = vshrl.u32 %v356, 7
    %v358 = vsub.s32 0, %v357
    %v359 = vrot.slane %v354, %v358
    %361 = vmatprep.subr.mxu0 0.0
    %362 = vmatpush1.msra.mxu0 %v353
    %363 = vmatprep.subr.mxu0 0.0
    %364 = vmatpush1.msra.mxu0 %v352
    %365 = vmatprep.subr.mxu0 0.0
    %366 = vmatpush1.msra.mxu0 %v351
    %367 = vmatprep.subr.mxu0 0.0
    %368 = vmatpush1.msra.mxu0 %v350
    %369 = vmatprep.subr.mxu0 0.0
    %370 = vmatpush1.msra.mxu0 %v349
    %371 = vmatprep.subr.mxu0 0.0
    %372 = vmatpush1.msra.mxu0 %v348
    %373 = vmatprep.subr.mxu0 0.0
    %374 = vmatpush1.msra.mxu0 %v347
    %375 = vmatprep.subr.mxu0 0.0
    %376 = vmatpush1.msra.mxu0 %v346
    %377 = vmatprep.subr.mxu0 0.0
    %378 = vmatpush1.msra.mxu0 %v345
    %379 = vmatprep.subr.mxu0 0.0
    %380 = vmatpush1.msra.mxu0 %v344
    %381 = vmatprep.subr.mxu0 0.0
    %382 = vmatpush1.msra.mxu0 %v343
    %383 = vmatprep.subr.mxu0 0.0
    %384 = vmatpush1.msra.mxu0 %v342
    %385 = vmatprep.subr.mxu0 0.0
    %386 = vmatpush1.msra.mxu0 %v341
    %387 = vmatprep.subr.mxu0 0.0
    %388 = vmatpush1.msra.mxu0 %v340
    %389 = vmatprep.subr.mxu0 0.0
    %390 = vmatpush1.msra.mxu0 %v339
    %391 = vmatprep.subr.mxu0 0.0
    %392 = vmatpush1.msra.mxu0 %v338
    %393 = vmatprep.subr.mxu0 0.0
    %394 = vmatpush2.msra.mxu0 0.0
    %395 = vmatprep.subr.mxu0 0.0
    %396 = vmatpush2.msra.mxu0 0.0
    %397 = vmatprep.subr.mxu0 0.0
    %398 = vmatpush2.msra.mxu0 0.0
    %399 = vmatprep.subr.mxu0 0.0
    %400 = vmatpush2.msra.mxu0 0.0
    %401 = vmatprep.subr.mxu0 0.0
    %402 = vmatpush2.msra.mxu0 0.0
    %403 = vmatprep.subr.mxu0 0.0
    %404 = vmatpush2.msra.mxu0 0.0
    %405 = vmatprep.subr.mxu0 0.0
    %406 = vmatpush2.msra.mxu0 0.0
    %407 = vmatprep.subr.mxu0 0.0
    %408 = vmatpush2.msra.mxu0 0.0
    %409 = vmatprep.subr.mxu0 0.0
    %410 = vmatpush2.msra.mxu0 0.0
    %411 = vmatprep.subr.mxu0 0.0
    %412 = vmatpush2.msra.mxu0 0.0
    %413 = vmatprep.subr.mxu0 0.0
    %414 = vmatpush2.msra.mxu0 0.0
    %415 = vmatprep.subr.mxu0 0.0
    %416 = vmatpush2.msra.mxu0 0.0
    %417 = vmatprep.subr.mxu0 0.0
    %418 = vmatpush2.msra.mxu0 0.0
    %419 = vmatprep.subr.mxu0 0.0
    %420 = vmatpush2.msra.mxu0 0.0
    %421 = vmatprep.subr.mxu0 0.0
    %422 = vmatpush2.msra.mxu0 0.0
    %423 = vmatprep.subr.mxu0 0.0
    %424 = vmatpush2.msra.mxu0 0.0
    %425 = vmatprep.mubr.f32.mxu0 0.0
    %426 = vmatmul.mubr.f32.gmra.mxu0 %v330
    %v427 = vpop.f32.mrf.mxu0
    %v428 = vadd.f32 %v359, %v427
    %v429 = vpop.f32.mrf.mxu0
    %430 = vmatprep.mubr.f32.mxu0 0.0
    %431 = vmatmul.mubr.f32.gmra.mxu0 %v331
    %v432 = vpop.f32.mrf.mxu0
    %v433 = vadd.f32 %v359, %v432
    %v434 = vpop.f32.mrf.mxu0
    %435 = vmatprep.mubr.f32.mxu0 0.0
    %436 = vmatmul.mubr.f32.gmra.mxu0 %v332
    %v437 = vpop.f32.mrf.mxu0
    %v438 = vadd.f32 %v359, %v437
    %v439 = vpop.f32.mrf.mxu0
    %440 = vmatprep.mubr.f32.mxu0 0.0
    %441 = vmatmul.mubr.f32.gmra.mxu0 %v333
    %v442 = vpop.f32.mrf.mxu0
    %v443 = vadd.f32 %v359, %v442
    %v444 = vpop.f32.mrf.mxu0
    %445 = vmatprep.mubr.f32.mxu0 0.0
    %446 = vmatmul.mubr.f32.gmra.mxu0 %v334
    %v447 = vpop.f32.mrf.mxu0
    %v448 = vadd.f32 %v359, %v447
    %v449 = vpop.f32.mrf.mxu0
    %450 = vmatprep.mubr.f32.mxu0 0.0
    %451 = vmatmul.mubr.f32.gmra.mxu0 %v335
    %v452 = vpop.f32.mrf.mxu0
    %v453 = vadd.f32 %v359, %v452
    %v454 = vpop.f32.mrf.mxu0
    %455 = vmatprep.mubr.f32.mxu0 0.0
    %456 = vmatmul.mubr.f32.gmra.mxu0 %v336
    %v457 = vpop.f32.mrf.mxu0
    %v458 = vadd.f32 %v359, %v457
    %v459 = vpop.f32.mrf.mxu0
    %460 = vmatprep.mubr.f32.mxu0 0.0
    %461 = vmatmul.mubr.f32.gmra.mxu0 %v337
    %v462 = vpop.f32.mrf.mxu0
    %v463 = vadd.f32 %v359, %v462
    %v464 = vpop.f32.mrf.mxu0
    %465 = vdwg.mxu0
    %466 = vst [vmem:[#allocation2] sm:$0xff] %v428
    %467 = vst [vmem:[#allocation2 + $0x8] sm:$0xff] %v433
    %468 = vst [vmem:[#allocation2 + $0x10] sm:$0xff] %v438
    %469 = vst [vmem:[#allocation2 + $0x18] sm:$0xff] %v443
    %470 = vst [vmem:[#allocation2 + $0x20] sm:$0xff] %v448
    %471 = vst [vmem:[#allocation2 + $0x28] sm:$0xff] %v453
    %472 = vst [vmem:[#allocation2 + $0x30] sm:$0xff] %v458
    %473 = vst [vmem:[#allocation2 + $0x38] sm:$0xff] %v463
    loop: start=0, step=1, limit=8
    $region57: #{_lambda_.1} parent=1 // loop_pre_header
      _
    $region58: #{_lambda_.1} parent=1 // loop_header
      %s475 = sphi 0, %s479
      %p476 = scmp.ge.s32.totalorder %s475, 8
      %v480 = vphi 0.0, %v571
    $region59: #{_lambda_.1} parent=1 // loop_header_branch
      %478 = sbr.rel (%p476) target = $region63
    $region60: #{_lambda_.1} parent=1 // loop_body
      %s481 = smul.u32 %s475, 8
      %s482 = scalar_lea.vmem [#allocation2], %s481
      %v483 = vld [vmem:[%s482] sm:$0xff]
      %v484 = vld [vmem:[#allocation8] sm:$0xff]
      %v485 = vld [vmem:[#allocation8 + $0x8] sm:$0xff]
      %v486 = vld [vmem:[#allocation8 + $0x10] sm:$0xff]
      %v487 = vld [vmem:[#allocation8 + $0x18] sm:$0xff]
      %v488 = vld [vmem:[#allocation8 + $0x20] sm:$0xff]
      %v489 = vld [vmem:[#allocation8 + $0x28] sm:$0xff]
      %v490 = vld [vmem:[#allocation8 + $0x30] sm:$0xff]
      %v491 = vld [vmem:[#allocation8 + $0x38] sm:$0xff]
      %v492 = vld [vmem:[#allocation8 + $0x40] sm:$0xff]
      %v493 = vld [vmem:[#allocation8 + $0x48] sm:$0xff]
      %v494 = vld [vmem:[#allocation8 + $0x50] sm:$0xff]
      %v495 = vld [vmem:[#allocation8 + $0x58] sm:$0xff]
      %v496 = vld [vmem:[#allocation8 + $0x60] sm:$0xff]
      %v497 = vld [vmem:[#allocation8 + $0x68] sm:$0xff]
      %v498 = vld [vmem:[#allocation8 + $0x70] sm:$0xff]
      %v499 = vld [vmem:[#allocation8 + $0x78] sm:$0xff]
      %500 = vmatprep.subr.mxu0 0.0
      %501 = vmatpush1.msra.mxu0 %v499
      %502 = vmatprep.subr.mxu0 0.0
      %503 = vmatpush1.msra.mxu0 %v498
      %504 = vmatprep.subr.mxu0 0.0
      %505 = vmatpush1.msra.mxu0 %v497
      %506 = vmatprep.subr.mxu0 0.0
      %507 = vmatpush1.msra.mxu0 %v496
      %508 = vmatprep.subr.mxu0 0.0
      %509 = vmatpush1.msra.mxu0 %v495
      %510 = vmatprep.subr.mxu0 0.0
      %511 = vmatpush1.msra.mxu0 %v494
      %512 = vmatprep.subr.mxu0 0.0
      %513 = vmatpush1.msra.mxu0 %v493
      %514 = vmatprep.subr.mxu0 0.0
      %515 = vmatpush1.msra.mxu0 %v492
      %516 = vmatprep.subr.mxu0 0.0
      %517 = vmatpush1.msra.mxu0 %v491
      %518 = vmatprep.subr.mxu0 0.0
      %519 = vmatpush1.msra.mxu0 %v490
      %520 = vmatprep.subr.mxu0 0.0
      %521 = vmatpush1.msra.mxu0 %v489
      %522 = vmatprep.subr.mxu0 0.0
      %523 = vmatpush1.msra.mxu0 %v488
      %524 = vmatprep.subr.mxu0 0.0
      %525 = vmatpush1.msra.mxu0 %v487
      %526 = vmatprep.subr.mxu0 0.0
      %527 = vmatpush1.msra.mxu0 %v486
      %528 = vmatprep.subr.mxu0 0.0
      %529 = vmatpush1.msra.mxu0 %v485
      %530 = vmatprep.subr.mxu0 0.0
      %531 = vmatpush1.msra.mxu0 %v484
      %532 = vmatprep.subr.mxu0 0.0
      %533 = vmatpush2.msra.mxu0 0.0
      %534 = vmatprep.subr.mxu0 0.0
      %535 = vmatpush2.msra.mxu0 0.0
      %536 = vmatprep.subr.mxu0 0.0
      %537 = vmatpush2.msra.mxu0 0.0
      %538 = vmatprep.subr.mxu0 0.0
      %539 = vmatpush2.msra.mxu0 0.0
      %540 = vmatprep.subr.mxu0 0.0
      %541 = vmatpush2.msra.mxu0 0.0
      %542 = vmatprep.subr.mxu0 0.0
      %543 = vmatpush2.msra.mxu0 0.0
      %544 = vmatprep.subr.mxu0 0.0
      %545 = vmatpush2.msra.mxu0 0.0
      %546 = vmatprep.subr.mxu0 0.0
      %547 = vmatpush2.msra.mxu0 0.0
      %548 = vmatprep.subr.mxu0 0.0
      %549 = vmatpush2.msra.mxu0 0.0
      %550 = vmatprep.subr.mxu0 0.0
      %551 = vmatpush2.msra.mxu0 0.0
      %552 = vmatprep.subr.mxu0 0.0
      %553 = vmatpush2.msra.mxu0 0.0
      %554 = vmatprep.subr.mxu0 0.0
      %555 = vmatpush2.msra.mxu0 0.0
      %556 = vmatprep.subr.mxu0 0.0
      %557 = vmatpush2.msra.mxu0 0.0
      %558 = vmatprep.subr.mxu0 0.0
      %559 = vmatpush2.msra.mxu0 0.0
      %560 = vmatprep.subr.mxu0 0.0
      %561 = vmatpush2.msra.mxu0 0.0
      %562 = vmatprep.subr.mxu0 0.0
      %563 = vmatpush2.msra.mxu0 0.0
      %564 = vmatprep.mubr.f32.mxu0 0.0
      %565 = vmatmul.mubr.f32.gmra.mxu0 %v480
      %v566 = vpop.f32.mrf.mxu0
      %v567 = vadd.f32 0.0, %v566
      %v568 = vpop.f32.mrf.mxu0
      %569 = vdwg.mxu0
      %v570 = vadd.f32 %v483, %v567
      %v571 = vtanh.pop %v570
      %s572 = scalar_lea.vmem [#allocation3], %s481
      %573 = vst [vmem:[%s572] sm:$0xff] %v571
    $region61: #{_lambda_.1} parent=1 // loop_footer
      %s479 = sadd.s32 1, %s475
    $region62: #{_lambda_.1} parent=1 // loop_footer_branch
      %474 = sbr.rel target = $region58
    $region63: #{_lambda_.1} parent=1 // loop_exit
      _
    %v574 = vld [vmem:[#allocation3] sm:$0xff]
    %v575 = vld [vmem:[#allocation3 + $0x8] sm:$0xff]
    %v576 = vld [vmem:[#allocation3 + $0x10] sm:$0xff]
    %v577 = vld [vmem:[#allocation3 + $0x18] sm:$0xff]
    %v578 = vld [vmem:[#allocation3 + $0x20] sm:$0xff]
    %v579 = vld [vmem:[#allocation3 + $0x28] sm:$0xff]
    %v580 = vld [vmem:[#allocation3 + $0x30] sm:$0xff]
    %v581 = vld [vmem:[#allocation3 + $0x38] sm:$0xff]
    %v582 = vld [vmem:[%s7] sm:$0xff]
    %v583 = vld [vmem:[%s7 + $0x8] sm:$0xff]
    %v584 = vld [vmem:[%s7 + $0x10] sm:$0xff]
    %v585 = vld [vmem:[%s7 + $0x18] sm:$0xff]
    %v586 = vld [vmem:[%s7 + $0x20] sm:$0xff]
    %v587 = vld [vmem:[%s7 + $0x28] sm:$0xff]
    %v588 = vld [vmem:[%s7 + $0x30] sm:$0xff]
    %v589 = vld [vmem:[%s7 + $0x38] sm:$0xff]
    %v590 = vld [vmem:[%s7 + $0x40] sm:$0xff]
    %v591 = vld [vmem:[%s7 + $0x48] sm:$0xff]
    %v592 = vld [vmem:[%s7 + $0x50] sm:$0xff]
    %v593 = vld [vmem:[%s7 + $0x58] sm:$0xff]
    %v594 = vld [vmem:[%s7 + $0x60] sm:$0xff]
    %v595 = vld [vmem:[%s7 + $0x68] sm:$0xff]
    %v596 = vld [vmem:[%s7 + $0x70] sm:$0xff]
    %v597 = vld [vmem:[%s7 + $0x78] sm:$0xff]
    %v598 = vld [vmem:[%s8] sm:$0x1]
    %v600 = vlaneseq
    %v601 = vshrl.u32 %v600, 7
    %v602 = vsub.s32 0, %v601
    %v603 = vrot.slane %v598, %v602
    %605 = vmatprep.subr.mxu0 0.0
    %606 = vmatpush1.msra.mxu0 %v597
    %607 = vmatprep.subr.mxu0 0.0
    %608 = vmatpush1.msra.mxu0 %v596
    %609 = vmatprep.subr.mxu0 0.0
    %610 = vmatpush1.msra.mxu0 %v595
    %611 = vmatprep.subr.mxu0 0.0
    %612 = vmatpush1.msra.mxu0 %v594
    %613 = vmatprep.subr.mxu0 0.0
    %614 = vmatpush1.msra.mxu0 %v593
    %615 = vmatprep.subr.mxu0 0.0
    %616 = vmatpush1.msra.mxu0 %v592
    %617 = vmatprep.subr.mxu0 0.0
    %618 = vmatpush1.msra.mxu0 %v591
    %619 = vmatprep.subr.mxu0 0.0
    %620 = vmatpush1.msra.mxu0 %v590
    %621 = vmatprep.subr.mxu0 0.0
    %622 = vmatpush1.msra.mxu0 %v589
    %623 = vmatprep.subr.mxu0 0.0
    %624 = vmatpush1.msra.mxu0 %v588
    %625 = vmatprep.subr.mxu0 0.0
    %626 = vmatpush1.msra.mxu0 %v587
    %627 = vmatprep.subr.mxu0 0.0
    %628 = vmatpush1.msra.mxu0 %v586
    %629 = vmatprep.subr.mxu0 0.0
    %630 = vmatpush1.msra.mxu0 %v585
    %631 = vmatprep.subr.mxu0 0.0
    %632 = vmatpush1.msra.mxu0 %v584
    %633 = vmatprep.subr.mxu0 0.0
    %634 = vmatpush1.msra.mxu0 %v583
    %635 = vmatprep.subr.mxu0 0.0
    %636 = vmatpush1.msra.mxu0 %v582
    %637 = vmatprep.subr.mxu0 0.0
    %638 = vmatpush2.msra.mxu0 0.0
    %639 = vmatprep.subr.mxu0 0.0
    %640 = vmatpush2.msra.mxu0 0.0
    %641 = vmatprep.subr.mxu0 0.0
    %642 = vmatpush2.msra.mxu0 0.0
    %643 = vmatprep.subr.mxu0 0.0
    %644 = vmatpush2.msra.mxu0 0.0
    %645 = vmatprep.subr.mxu0 0.0
    %646 = vmatpush2.msra.mxu0 0.0
    %647 = vmatprep.subr.mxu0 0.0
    %648 = vmatpush2.msra.mxu0 0.0
    %649 = vmatprep.subr.mxu0 0.0
    %650 = vmatpush2.msra.mxu0 0.0
    %651 = vmatprep.subr.mxu0 0.0
    %652 = vmatpush2.msra.mxu0 0.0
    %653 = vmatprep.subr.mxu0 0.0
    %654 = vmatpush2.msra.mxu0 0.0
    %655 = vmatprep.subr.mxu0 0.0
    %656 = vmatpush2.msra.mxu0 0.0
    %657 = vmatprep.subr.mxu0 0.0
    %658 = vmatpush2.msra.mxu0 0.0
    %659 = vmatprep.subr.mxu0 0.0
    %660 = vmatpush2.msra.mxu0 0.0
    %661 = vmatprep.subr.mxu0 0.0
    %662 = vmatpush2.msra.mxu0 0.0
    %663 = vmatprep.subr.mxu0 0.0
    %664 = vmatpush2.msra.mxu0 0.0
    %665 = vmatprep.subr.mxu0 0.0
    %666 = vmatpush2.msra.mxu0 0.0
    %667 = vmatprep.subr.mxu0 0.0
    %668 = vmatpush2.msra.mxu0 0.0
    %669 = vmatprep.mubr.f32.mxu0 0.0
    %670 = vmatmul.mubr.f32.gmra.mxu0 %v574
    %v671 = vpop.f32.mrf.mxu0
    %v672 = vadd.f32 %v603, %v671
    %v673 = vpop.f32.mrf.mxu0
    %674 = vmatprep.mubr.f32.mxu0 0.0
    %675 = vmatmul.mubr.f32.gmra.mxu0 %v575
    %v676 = vpop.f32.mrf.mxu0
    %v677 = vadd.f32 %v603, %v676
    %v678 = vpop.f32.mrf.mxu0
    %679 = vmatprep.mubr.f32.mxu0 0.0
    %680 = vmatmul.mubr.f32.gmra.mxu0 %v576
    %v681 = vpop.f32.mrf.mxu0
    %v682 = vadd.f32 %v603, %v681
    %v683 = vpop.f32.mrf.mxu0
    %684 = vmatprep.mubr.f32.mxu0 0.0
    %685 = vmatmul.mubr.f32.gmra.mxu0 %v577
    %v686 = vpop.f32.mrf.mxu0
    %v687 = vadd.f32 %v603, %v686
    %v688 = vpop.f32.mrf.mxu0
    %689 = vmatprep.mubr.f32.mxu0 0.0
    %690 = vmatmul.mubr.f32.gmra.mxu0 %v578
    %v691 = vpop.f32.mrf.mxu0
    %v692 = vadd.f32 %v603, %v691
    %v693 = vpop.f32.mrf.mxu0
    %694 = vmatprep.mubr.f32.mxu0 0.0
    %695 = vmatmul.mubr.f32.gmra.mxu0 %v579
    %v696 = vpop.f32.mrf.mxu0
    %v697 = vadd.f32 %v603, %v696
    %v698 = vpop.f32.mrf.mxu0
    %699 = vmatprep.mubr.f32.mxu0 0.0
    %700 = vmatmul.mubr.f32.gmra.mxu0 %v580
    %v701 = vpop.f32.mrf.mxu0
    %v702 = vadd.f32 %v603, %v701
    %v703 = vpop.f32.mrf.mxu0
    %704 = vmatprep.mubr.f32.mxu0 0.0
    %705 = vmatmul.mubr.f32.gmra.mxu0 %v581
    %v706 = vpop.f32.mrf.mxu0
    %v707 = vadd.f32 %v603, %v706
    %v708 = vpop.f32.mrf.mxu0
    %709 = vdwg.mxu0
    %v710 = vxor.u32 %v672, 2147483648
    %v711 = vxor.u32 %v677, 2147483648
    %v712 = vxor.u32 %v682, 2147483648
    %v713 = vxor.u32 %v687, 2147483648
    %v714 = vxor.u32 %v692, 2147483648
    %v715 = vxor.u32 %v697, 2147483648
    %v716 = vxor.u32 %v702, 2147483648
    %v717 = vxor.u32 %v707, 2147483648
    %v718 = vmul.f32 %v710, 1.442695
    %v719 = vpow.pop %v718
    %v720 = vmul.f32 %v711, 1.442695
    %v721 = vpow.pop %v720
    %v722 = vmul.f32 %v712, 1.442695
    %v723 = vpow.pop %v722
    %v724 = vmul.f32 %v713, 1.442695
    %v725 = vpow.pop %v724
    %v726 = vmul.f32 %v714, 1.442695
    %v727 = vpow.pop %v726
    %v728 = vmul.f32 %v715, 1.442695
    %v729 = vpow.pop %v728
    %v730 = vmul.f32 %v716, 1.442695
    %v731 = vpow.pop %v730
    %v732 = vmul.f32 %v717, 1.442695
    %v733 = vpow.pop %v732
    %v734 = vadd.f32 %v719, 1.0
    %v735 = vadd.f32 %v721, 1.0
    %v736 = vadd.f32 %v723, 1.0
    %v737 = vadd.f32 %v725, 1.0
    %v738 = vadd.f32 %v727, 1.0
    %v739 = vadd.f32 %v729, 1.0
    %v740 = vadd.f32 %v731, 1.0
    %v741 = vadd.f32 %v733, 1.0
    %v742 = vrcp.pop %v734
    %v743 = vmul.f32 1.0, %v742
    %v744 = vrcp.pop %v735
    %v745 = vmul.f32 1.0, %v744
    %v746 = vrcp.pop %v736
    %v747 = vmul.f32 1.0, %v746
    %v748 = vrcp.pop %v737
    %v749 = vmul.f32 1.0, %v748
    %v750 = vrcp.pop %v738
    %v751 = vmul.f32 1.0, %v750
    %v752 = vrcp.pop %v739
    %v753 = vmul.f32 1.0, %v752
    %v754 = vrcp.pop %v740
    %v755 = vmul.f32 1.0, %v754
    %v756 = vrcp.pop %v741
    %v757 = vmul.f32 1.0, %v756
    %758 = vst [vmem:[%s9] sm:$0xff] %v743
    %759 = vst [vmem:[%s9 + $0x8] sm:$0xff] %v745
    %760 = vst [vmem:[%s9 + $0x10] sm:$0xff] %v747
    %761 = vst [vmem:[%s9 + $0x18] sm:$0xff] %v749
    %762 = vst [vmem:[%s9 + $0x20] sm:$0xff] %v751
    %763 = vst [vmem:[%s9 + $0x28] sm:$0xff] %v753
    %764 = vst [vmem:[%s9 + $0x30] sm:$0xff] %v755
    %765 = vst [vmem:[%s9 + $0x38] sm:$0xff] %v757
    // Predicated region
    $region64: #{_lambda_.1} parent=1 // pred_check
      _
    $region65: #{_lambda_.1} parent=1 // pred_check_branch
      %767 = sbr.rel (0) target = $region67
    $region66: #{_lambda_.1} parent=1 // pred_region
      _
    $region67: #{_lambda_.1} parent=1 // pred_fallthru
      _
    // Predicated region
    $region68: #{_lambda_.1} parent=1 // pred_check
      _
    $region69: #{_lambda_.1} parent=1 // pred_check_branch
      %769 = sbr.rel (0) target = $region71
    $region70: #{_lambda_.1} parent=1 // pred_region
      _
    $region71: #{_lambda_.1} parent=1 // pred_fallthru
      _
    %770 = vsyncpa [#allocation5], 1
    %771 = vsyncpa [#allocation7], 1

</llo_original>
